<compile_context>
chip_gen: v6e
topology: v6e:2x2x1
jax: 0.10.0
libtpu: 0.0.40
codegen_flags: <defaults>
</compile_context>

<pallas_src>
import jax
import jax.numpy as jnp
from jax.experimental import pallas as pl
from jax.experimental.pallas import tpu as pltpu


def _softplus(x):
    # Numerically stable softplus: max(x, 0) + log1p(exp(-|x|))
    return jnp.maximum(x, 0.0) + jnp.log1p(jnp.exp(-jnp.abs(x)))


def _beta_kernel(c0_ref, c1_ref, alpha_ref, beta_ref, mean_ref):
    alpha = _softplus(c0_ref[...])
    beta = _softplus(c1_ref[...])
    alpha_ref[...] = alpha
    beta_ref[...] = beta
    # NOTE: if both halves underflow softplus to exactly 0 (x < ~-88 in f32),
    # the mean is 0/0 = NaN, matching PyTorch's Beta behavior.
    mean_ref[...] = alpha * pl.reciprocal(alpha + beta, approx=False)


def beta_likelihood_forward(logits, dim=1, return_mean=True):
    """logits: (N, 2*L, H, W) float32 (NCHW).

    Returns (mean, alpha, beta), each (N, L, H, W); (alpha, beta) are the Beta
    concentrations (concentration1, concentration0).
    """
    assert dim == 1, "kernel implemented for channel dim=1 (NCHW)"
    N, C, H, W = logits.shape
    assert C % 2 == 0
    L = C // 2
    HW = H * W

    # Free, contiguous reshape: channel axis 2L -> (2, L). No HBM copies.
    x = logits.reshape(N, 2, L, HW).astype(jnp.float32)

    # Tile the L axis toward ~1 MiB f32 blocks (lane axis = full H*W, which is
    # always legal as the full last array dim).
    target_rows = max(8, (1 << 20) // (HW * 4))
    if L < 8:
        tile_L = L                      # full dim -> legal sublane block
    else:
        tile_L = min(L, target_rows)
        tile_L -= tile_L % 8            # multiple of 8; partial last block OK

    grid = (N, pl.cdiv(L, tile_L))

    # Input blocks pick half 0 (c0 / concentration1) vs half 1 (c1); the
    # size-1 N and half axes are squeezed so kernel refs are (tile_L, HW).
    c0_spec = pl.BlockSpec((None, None, tile_L, HW), lambda n, i: (n, 0, i, 0))
    c1_spec = pl.BlockSpec((None, None, tile_L, HW), lambda n, i: (n, 1, i, 0))
    out_spec = pl.BlockSpec((None, tile_L, HW), lambda n, i: (n, i, 0))

    out_sds = jax.ShapeDtypeStruct((N, L, HW), jnp.float32)

    # VMEM budget: 5 live arrays (2 in + 3 out) x 2 pipeline buffers per block,
    # plus headroom; cap at 64 MiB so it also fits v7x.
    block_bytes = tile_L * HW * 4
    vmem_limit = int(min(max(10 * block_bytes + (8 << 20), 32 << 20), 64 << 20))

    elems = N * L * HW
    cost = pl.CostEstimate(flops=8 * elems,
                           transcendentals=5 * elems,
                           bytes_accessed=5 * elems * 4)

    alpha3, beta3, mean3 = pl.pallas_call(
        _beta_kernel,
        grid=grid,
        in_specs=[c0_spec, c1_spec],
        out_specs=(out_spec, out_spec, out_spec),
        out_shape=(out_sds, out_sds, out_sds),
        compiler_params=pltpu.CompilerParams(
            dimension_semantics=("parallel", "parallel"),
            vmem_limit_bytes=vmem_limit),
        cost_estimate=cost,
    )(x, x)   # same array twice: each spec only DMAs its own half

    alpha = alpha3.reshape(N, L, H, W)
    beta = beta3.reshape(N, L, H, W)
    mean = mean3.reshape(N, L, H, W)
    if return_mean:
        return mean, alpha, beta
    return alpha, beta


def _reference(logits):
    sp = jax.nn.softplus(logits)
    L = logits.shape[1] // 2
    a, b = sp[:, :L], sp[:, L:]
    return a / (a + b), a, b


if __name__ == "__main__":
    key = jax.random.PRNGKey(0)
    # domain_size=4 -> params_size = 8 channels.
    N, L, H, W = 2, 4, 16, 16
    logits = jax.random.normal(key, (N, 2 * L, H, W), dtype=jnp.float32)

    mean, alpha, beta = beta_likelihood_forward(logits, dim=1, return_mean=True)
    jax.block_until_ready((mean, alpha, beta))

    ref_mean, ref_a, ref_b = _reference(logits)
    assert jnp.allclose(mean, ref_mean, atol=1e-5, rtol=1e-5)
    assert jnp.allclose(alpha, ref_a, atol=1e-5, rtol=1e-5)
    assert jnp.allclose(beta, ref_b, atol=1e-5, rtol=1e-5)
    print("KERNEL_OK")
</pallas_src>

<mosaic_0001>
module attributes {stable_mosaic.version = 11 : i64} {
  func.func @_beta_kernel(%arg0: i32, %arg1: i32, %arg2: memref<1x1x4x256xf32, #tpu.memory_space<vmem>>, %arg3: memref<1x1x4x256xf32, #tpu.memory_space<vmem>>, %arg4: memref<1x4x256xf32, #tpu.memory_space<vmem>>, %arg5: memref<1x4x256xf32, #tpu.memory_space<vmem>>, %arg6: memref<1x4x256xf32, #tpu.memory_space<vmem>>) attributes {dimension_semantics = [#tpu.dimension_semantics<parallel>, #tpu.dimension_semantics<parallel>], iteration_bounds = array<i64: 2, 1>, scalar_prefetch = 0 : i64, scratch_operands = 0 : i64, tpu.core_type = #tpu.core_type<tc>, window_params = [{transform_indices = @transform_0, window_bounds = array<i64: 1, 1, 4, 256>}, {transform_indices = @transform_1, window_bounds = array<i64: 1, 1, 4, 256>}, {transform_indices = @transform_2, window_bounds = array<i64: 1, 4, 256>}, {transform_indices = @transform_3, window_bounds = array<i64: 1, 4, 256>}, {transform_indices = @transform_4, window_bounds = array<i64: 1, 4, 256>}]} {
    %c0 = arith.constant 0 : index
    %c0_0 = arith.constant 0 : index
    %c0_1 = arith.constant 0 : index
    %c0_2 = arith.constant 0 : index
    %0 = vector.load %arg2[%c0, %c0_0, %c0_1, %c0_2] : memref<1x1x4x256xf32, #tpu.memory_space<vmem>>, vector<1x1x4x256xf32>
    %1 = vector.shape_cast %0 : vector<1x1x4x256xf32> to vector<4x256xf32>
    %cst = arith.constant 0.000000e+00 : f32
    %2 = vector.broadcast %cst : f32 to vector<4x256xf32>
    %3 = arith.maximumf %1, %2 : vector<4x256xf32>
    %4 = math.absf %1 : vector<4x256xf32>
    %cst_3 = arith.constant 0.000000e+00 : f32
    %5 = vector.broadcast %cst_3 : f32 to vector<4x256xf32>
    %6 = arith.subf %5, %4 : vector<4x256xf32>
    %7 = math.exp %6 : vector<4x256xf32>
    %8 = math.log1p %7 : vector<4x256xf32>
    %9 = arith.addf %3, %8 : vector<4x256xf32>
    %c0_4 = arith.constant 0 : index
    %c0_5 = arith.constant 0 : index
    %c0_6 = arith.constant 0 : index
    %c0_7 = arith.constant 0 : index
    %10 = vector.load %arg3[%c0_4, %c0_5, %c0_6, %c0_7] : memref<1x1x4x256xf32, #tpu.memory_space<vmem>>, vector<1x1x4x256xf32>
    %11 = vector.shape_cast %10 : vector<1x1x4x256xf32> to vector<4x256xf32>
    %cst_8 = arith.constant 0.000000e+00 : f32
    %12 = vector.broadcast %cst_8 : f32 to vector<4x256xf32>
    %13 = arith.maximumf %11, %12 : vector<4x256xf32>
    %14 = math.absf %11 : vector<4x256xf32>
    %cst_9 = arith.constant 0.000000e+00 : f32
    %15 = vector.broadcast %cst_9 : f32 to vector<4x256xf32>
    %16 = arith.subf %15, %14 : vector<4x256xf32>
    %17 = math.exp %16 : vector<4x256xf32>
    %18 = math.log1p %17 : vector<4x256xf32>
    %19 = arith.addf %13, %18 : vector<4x256xf32>
    %c0_10 = arith.constant 0 : index
    %c0_11 = arith.constant 0 : index
    %c0_12 = arith.constant 0 : index
    %20 = vector.load %arg4[%c0_10, %c0_11, %c0_12] : memref<1x4x256xf32, #tpu.memory_space<vmem>>, vector<1x4x256xf32>
    %21 = vector.shape_cast %20 : vector<1x4x256xf32> to vector<4x256xf32>
    %22 = vector.shape_cast %9 : vector<4x256xf32> to vector<1x4x256xf32>
    tpu.vector_store %arg4[%c0_10, %c0_11, %c0_12], %22 {strides = array<i32>} : memref<1x4x256xf32, #tpu.memory_space<vmem>>, vector<1x4x256xf32>,
    %c0_13 = arith.constant 0 : index
    %c0_14 = arith.constant 0 : index
    %c0_15 = arith.constant 0 : index
    %23 = vector.load %arg5[%c0_13, %c0_14, %c0_15] : memref<1x4x256xf32, #tpu.memory_space<vmem>>, vector<1x4x256xf32>
    %24 = vector.shape_cast %23 : vector<1x4x256xf32> to vector<4x256xf32>
    %25 = vector.shape_cast %19 : vector<4x256xf32> to vector<1x4x256xf32>
    tpu.vector_store %arg5[%c0_13, %c0_14, %c0_15], %25 {strides = array<i32>} : memref<1x4x256xf32, #tpu.memory_space<vmem>>, vector<1x4x256xf32>,
    %26 = arith.addf %9, %19 : vector<4x256xf32>
    %27 = tpu.reciprocal %26 : vector<4x256xf32> -> vector<4x256xf32>
    %28 = arith.mulf %9, %27 : vector<4x256xf32>
    %c0_16 = arith.constant 0 : index
    %c0_17 = arith.constant 0 : index
    %c0_18 = arith.constant 0 : index
    %29 = vector.load %arg6[%c0_16, %c0_17, %c0_18] : memref<1x4x256xf32, #tpu.memory_space<vmem>>, vector<1x4x256xf32>
    %30 = vector.shape_cast %29 : vector<1x4x256xf32> to vector<4x256xf32>
    %31 = vector.shape_cast %28 : vector<4x256xf32> to vector<1x4x256xf32>
    tpu.vector_store %arg6[%c0_16, %c0_17, %c0_18], %31 {strides = array<i32>} : memref<1x4x256xf32, #tpu.memory_space<vmem>>, vector<1x4x256xf32>,
    return
  }
  func.func @transform_0(%arg0: i32, %arg1: i32) -> (i32, i32, i32, i32) {
    %c0_i32 = arith.constant 0 : i32
    %c0_i32_0 = arith.constant 0 : i32
    %c0_i32_1 = arith.constant 0 : i32
    return %arg0, %c0_i32, %arg1, %c0_i32_0 : i32, i32, i32, i32
  }
  func.func @transform_1(%arg0: i32, %arg1: i32) -> (i32, i32, i32, i32) {
    %c1_i32 = arith.constant 1 : i32
    %c0_i32 = arith.constant 0 : i32
    %c0_i32_0 = arith.constant 0 : i32
    return %arg0, %c1_i32, %arg1, %c0_i32 : i32, i32, i32, i32
  }
  func.func @transform_2(%arg0: i32, %arg1: i32) -> (i32, i32, i32) {
    %c0_i32 = arith.constant 0 : i32
    %c0_i32_0 = arith.constant 0 : i32
    return %arg0, %arg1, %c0_i32 : i32, i32, i32
  }
  func.func @transform_3(%arg0: i32, %arg1: i32) -> (i32, i32, i32) {
    %c0_i32 = arith.constant 0 : i32
    %c0_i32_0 = arith.constant 0 : i32
    return %arg0, %arg1, %c0_i32 : i32, i32, i32
  }
  func.func @transform_4(%arg0: i32, %arg1: i32) -> (i32, i32, i32) {
    %c0_i32 = arith.constant 0 : i32
    %c0_i32_0 = arith.constant 0 : i32
    return %arg0, %arg1, %c0_i32 : i32, i32, i32
  }
}

</mosaic_0001>

<llo_original>
// kernel: tpu_custom_call.1
$region0: #{tpu_custom_call.1}
  #allocation0 [shape = 'u32[]', space=smem, size = 0x4, offset = 0x4, fixed_abs, tag = 'smem constant byte address 0x4 - core index']
  #allocation1 [shape = 'u32[144,128]{1,0:T(1,128)}', space=vmem, size = 0x12000, scoped, tag = 'internal scratch']
  %s0 = inlined_call_operand.hbm [shape: f32[2,2,4,256], index: 0, kind: input, shape index: {}]
  %s1 = inlined_call_operand.hbm [shape: f32[2,2,4,256], index: 1, kind: input, shape index: {}]
  %s2 = inlined_call_operand.hbm [shape: f32[2,4,256], index: 2, kind: output, shape index: {0}]
  %s3 = inlined_call_operand.hbm [shape: f32[2,4,256], index: 3, kind: output, shape index: {1}]
  %s4 = inlined_call_operand.hbm [shape: f32[2,4,256], index: 4, kind: output, shape index: {2}]
  %5 = xla_tuple %s2, %s3, %s4
  %s6 = sld [smem:[#allocation0]]
  $region65: #{tpu_custom_call.1} parent=0
    _
  %s8 = ssub.s32 1, %s6
  %s9 = scalar_select 0, %s8, %s6
  $region1: #{tpu_custom_call.1} parent=0
    #allocation2 [shape = 'u8[8192]{0}', space=vmem, size = 0x2000, scoped, tag = 'input window, operand 0']
    #allocation3 [shape = 's32[2]{0}', space=sflag, size = 0x8, scoped, tag = 'scoped memory for tpu_custom_call.1']
    #allocation4 [shape = 's32[2]{0}', space=sflag, size = 0x8, scoped, tag = 'scoped memory for tpu_custom_call.1']
    #allocation5 [shape = 'u8[8192]{0}', space=vmem, size = 0x2000, scoped, tag = 'input window, operand 1']
    #allocation6 [shape = 's32[2]{0}', space=sflag, size = 0x8, scoped, tag = 'scoped memory for tpu_custom_call.1']
    #allocation7 [shape = 'u8[8192]{0}', space=vmem, size = 0x2000, scoped, tag = 'output window, operand 0']
    #allocation8 [shape = 'u8[8192]{0}', space=vmem, size = 0x2000, scoped, tag = 'output window, operand 1']
    #allocation9 [shape = 's32[2]{0}', space=sflag, size = 0x8, scoped, tag = 'scoped memory for tpu_custom_call.1']
    #allocation10 [shape = 'u8[8192]{0}', space=vmem, size = 0x2000, scoped, tag = 'output window, operand 2']
    %10 = vsyncpa [#allocation3], 0
    %s11 = scalar_lea.sflag [#allocation3], 1
    %12 = vsyncpa %s11, 0
    %13 = vsyncpa [#allocation6], 0
    %s14 = scalar_lea.sflag [#allocation6], 1
    %15 = vsyncpa %s14, 0
    %16 = vsyncpa [#allocation4], 0
    %s17 = scalar_lea.sflag [#allocation4], 1
    %18 = vsyncpa %s17, 0
    %19 = vsyncpa [#allocation9], 0
    %s20 = scalar_lea.sflag [#allocation9], 1
    %21 = vsyncpa %s20, 0
    loop: start=0, step=1, limit=4
    $region2: #{tpu_custom_call.1} parent=1 // loop_pre_header
      _
    $region3: #{tpu_custom_call.1} parent=1 // loop_header
      %s23 = sphi 0, %s27
      %p24 = scmp.ge.s32.totalorder %s23, 4
      %s30 = sphi 0, %s42
      %s31 = sphi 0, %s38
      %s32 = sphi 0, %s30
      %s33 = sphi 0, %s31
      %s34 = sphi 0, %s32
      %s35 = sphi 0, %s33
      %s47 = sphi 0, %s49
      %s50 = sphi 0, %s47
      %s51 = sphi 0, %s50
      %s67 = sphi 0, %s51
      %s75 = sphi 0, %s77
      %s78 = sphi 0, %s75
      %s79 = sphi 0, %s78
      %s95 = sphi 0, %s79
      %s103 = sphi 0, %s105
      %s106 = sphi 0, %s103
      %s107 = sphi 0, %s106
      %s123 = sphi 0, %s107
      %s131 = sphi 0, %s133
      %s134 = sphi 0, %s131
      %s135 = sphi 0, %s134
      %s151 = sphi 0, %s135
      %s159 = sphi 0, %s161
      %s162 = sphi 0, %s159
      %s163 = sphi 0, %s162
      %s179 = sphi 0, %s163
    $region4: #{tpu_custom_call.1} parent=1 // loop_header_branch
      %26 = sbr.rel (%p24) target = $region8
    $region5: #{tpu_custom_call.1} parent=1 // loop_body
      %s28 = ssub.s32 %s23, 1
      %s29 = ssub.s32 %s23, 2
      %s36 = sadd.s32 1, %s31
      %p37 = scmp.ge.s32.totalorder %s36, 1
      %s38 = scalar_select %p37, 0, %s36
      %s39 = sadd.s32 1, %s30
      %s40 = scalar_select %p37, %s39, %s30
      %p41 = scmp.ge.s32.totalorder %s40, 2
      %s42 = scalar_select %p41, 0, %s40
      %s43 = ssub.s32 %s30, %s42
      %s44 = ssub.s32 %s31, %s38
      %s45 = sor.u32 %s43, %s44
      %p46 = scmp.eq.s32.totalorder %s45, 0
      %s48 = sadd.s32 %s47, 1
      %s49 = scalar_select %p46, %s47, %s48
      %p52 = pneg %p46
      %p53 = scmp.eq.s32.totalorder %s23, 1
      %p54 = por %p52, %p53
      %p55 = scmp.ne.s32.totalorder %s47, %s50
      %p56 = scmp.eq.s32.totalorder %s23, 0
      %p57 = por %p55, %p56
      %p58 = scmp.ne.s32.totalorder %s47, %s50
      %p59 = scmp.eq.s32.totalorder %s28, 1
      %p60 = por %p58, %p59
      %p61 = scmp.ne.s32.totalorder %s50, %s51
      %p62 = scmp.eq.s32.totalorder %s28, 0
      %p63 = por %p61, %p62
      %p64 = scmp.ne.s32.totalorder %s50, %s51
      %p65 = scmp.eq.s32.totalorder %s29, 1
      %p66 = por %p64, %p65
      %p68 = scmp.ne.s32.totalorder %s51, %s67
      %p69 = scmp.eq.s32.totalorder %s29, 0
      %p70 = por %p68, %p69
      %s71 = ssub.s32 %s30, %s42
      %s72 = ssub.s32 %s31, %s38
      %s73 = sor.u32 %s71, %s72
      %p74 = scmp.eq.s32.totalorder %s73, 0
      %s76 = sadd.s32 %s75, 1
      %s77 = scalar_select %p74, %s75, %s76
      %p80 = pneg %p74
      %p81 = scmp.eq.s32.totalorder %s23, 1
      %p82 = por %p80, %p81
      %p83 = scmp.ne.s32.totalorder %s75, %s78
      %p84 = scmp.eq.s32.totalorder %s23, 0
      %p85 = por %p83, %p84
      %p86 = scmp.ne.s32.totalorder %s75, %s78
      %p87 = scmp.eq.s32.totalorder %s28, 1
      %p88 = por %p86, %p87
      %p89 = scmp.ne.s32.totalorder %s78, %s79
      %p90 = scmp.eq.s32.totalorder %s28, 0
      %p91 = por %p89, %p90
      %p92 = scmp.ne.s32.totalorder %s78, %s79
      %p93 = scmp.eq.s32.totalorder %s29, 1
      %p94 = por %p92, %p93
      %p96 = scmp.ne.s32.totalorder %s79, %s95
      %p97 = scmp.eq.s32.totalorder %s29, 0
      %p98 = por %p96, %p97
      %s99 = ssub.s32 %s30, %s42
      %s100 = ssub.s32 %s31, %s38
      %s101 = sor.u32 %s99, %s100
      %p102 = scmp.eq.s32.totalorder %s101, 0
      %s104 = sadd.s32 %s103, 1
      %s105 = scalar_select %p102, %s103, %s104
      %p108 = pneg %p102
      %p109 = scmp.eq.s32.totalorder %s23, 1
      %p110 = por %p108, %p109
      %p111 = scmp.ne.s32.totalorder %s103, %s106
      %p112 = scmp.eq.s32.totalorder %s23, 0
      %p113 = por %p111, %p112
      %p114 = scmp.ne.s32.totalorder %s103, %s106
      %p115 = scmp.eq.s32.totalorder %s28, 1
      %p116 = por %p114, %p115
      %p117 = scmp.ne.s32.totalorder %s106, %s107
      %p118 = scmp.eq.s32.totalorder %s28, 0
      %p119 = por %p117, %p118
      %p120 = scmp.ne.s32.totalorder %s106, %s107
      %p121 = scmp.eq.s32.totalorder %s29, 1
      %p122 = por %p120, %p121
      %p124 = scmp.ne.s32.totalorder %s107, %s123
      %p125 = scmp.eq.s32.totalorder %s29, 0
      %p126 = por %p124, %p125
      %s127 = ssub.s32 %s30, %s42
      %s128 = ssub.s32 %s31, %s38
      %s129 = sor.u32 %s127, %s128
      %p130 = scmp.eq.s32.totalorder %s129, 0
      %s132 = sadd.s32 %s131, 1
      %s133 = scalar_select %p130, %s131, %s132
      %p136 = pneg %p130
      %p137 = scmp.eq.s32.totalorder %s23, 1
      %p138 = por %p136, %p137
      %p139 = scmp.ne.s32.totalorder %s131, %s134
      %p140 = scmp.eq.s32.totalorder %s23, 0
      %p141 = por %p139, %p140
      %p142 = scmp.ne.s32.totalorder %s131, %s134
      %p143 = scmp.eq.s32.totalorder %s28, 1
      %p144 = por %p142, %p143
      %p145 = scmp.ne.s32.totalorder %s134, %s135
      %p146 = scmp.eq.s32.totalorder %s28, 0
      %p147 = por %p145, %p146
      %p148 = scmp.ne.s32.totalorder %s134, %s135
      %p149 = scmp.eq.s32.totalorder %s29, 1
      %p150 = por %p148, %p149
      %p152 = scmp.ne.s32.totalorder %s135, %s151
      %p153 = scmp.eq.s32.totalorder %s29, 0
      %p154 = por %p152, %p153
      %s155 = ssub.s32 %s30, %s42
      %s156 = ssub.s32 %s31, %s38
      %s157 = sor.u32 %s155, %s156
      %p158 = scmp.eq.s32.totalorder %s157, 0
      %s160 = sadd.s32 %s159, 1
      %s161 = scalar_select %p158, %s159, %s160
      %p164 = pneg %p158
      %p165 = scmp.eq.s32.totalorder %s23, 1
      %p166 = por %p164, %p165
      %p167 = scmp.ne.s32.totalorder %s159, %s162
      %p168 = scmp.eq.s32.totalorder %s23, 0
      %p169 = por %p167, %p168
      %p170 = scmp.ne.s32.totalorder %s159, %s162
      %p171 = scmp.eq.s32.totalorder %s28, 1
      %p172 = por %p170, %p171
      %p173 = scmp.ne.s32.totalorder %s162, %s163
      %p174 = scmp.eq.s32.totalorder %s28, 0
      %p175 = por %p173, %p174
      %p176 = scmp.ne.s32.totalorder %s162, %s163
      %p177 = scmp.eq.s32.totalorder %s29, 1
      %p178 = por %p176, %p177
      %p180 = scmp.ne.s32.totalorder %s163, %s179
      %p181 = scmp.eq.s32.totalorder %s29, 0
      %p182 = por %p180, %p181
      %p183 = scmp.le.s32.totalorder 1, %s23
      %p184 = scmp.lt.s32.totalorder %s23, 3
      %p185 = pnand %p183, %p184
      %p186 = pneg %p185
      // Predicated region
      $region9: #{tpu_custom_call.1} parent=5 // pred_check
        _
      $region10: #{tpu_custom_call.1} parent=5 // pred_check_branch
        %188 = sbr.rel (%p185) target = $region12
      $region11: #{tpu_custom_call.1} parent=5 // pred_region
        %s189 = ssub.s32 %s23, 1
      $region12: #{tpu_custom_call.1} parent=5 // pred_fallthru
        _
      %p190 = scmp.lt.s32.totalorder %s23, 2
      // Predicated region
      $region13: #{tpu_custom_call.1} parent=5 // pred_check
        %p191 = pneg %p190
      $region14: #{tpu_custom_call.1} parent=5 // pred_check_branch
        %193 = sbr.rel (%p191) target = $region16
      $region15: #{tpu_custom_call.1} parent=5 // pred_region
        // Predicated region
        $region17: #{tpu_custom_call.1} parent=15 // pred_check
          %p194 = pneg %p57
        $region18: #{tpu_custom_call.1} parent=15 // pred_check_branch
          %196 = sbr.rel (%p194) target = $region20
        $region19: #{tpu_custom_call.1} parent=15 // pred_region
          %s197 = sand.u32 %s47, 1
          %s198 = scalar_lea.sflag [#allocation3], %s197
          %s199 = sand.u32 %s47, 1
          %s200 = smul.addr %s199, 8
          %s201 = scalar_lea.vmem [#allocation2], %s200
          %s203 = ssub.s32 128, 128
          %204 = vsyncadd %s198, %s203
          %s205 = smul.addr %s31, 2
          %s206 = smul.addr %s30, 4
          %s207 = sadd.s32 %s205, %s206
          %s208 = smul.addr %s207, 64
          %s209 = scalar_lea.hbm %s0, %s208
          %s211 = sshll.u32 %s201, 4
          %s212 = int_to_ptr.vmem [resolvable:$true] %s211
          %214 = dma.hbm_to_vmem [thread:$0]  %s209, 128, %s212, %s198
        $region20: #{tpu_custom_call.1} parent=15 // pred_fallthru
          _
        // Predicated region
        $region21: #{tpu_custom_call.1} parent=15 // pred_check
          %p215 = pneg %p85
        $region22: #{tpu_custom_call.1} parent=15 // pred_check_branch
          %217 = sbr.rel (%p215) target = $region24
        $region23: #{tpu_custom_call.1} parent=15 // pred_region
          %s218 = sand.u32 %s75, 1
          %s219 = scalar_lea.sflag [#allocation6], %s218
          %s220 = sand.u32 %s75, 1
          %s221 = smul.addr %s220, 8
          %s222 = scalar_lea.vmem [#allocation5], %s221
          %s224 = ssub.s32 128, 128
          %225 = vsyncadd %s219, %s224
          %s226 = smul.addr %s31, 2
          %s227 = sadd.s32 %s226, 2
          %s228 = smul.addr %s30, 4
          %s229 = sadd.s32 %s227, %s228
          %s230 = smul.addr %s229, 64
          %s231 = scalar_lea.hbm %s1, %s230
          %s233 = sshll.u32 %s222, 4
          %s234 = int_to_ptr.vmem [resolvable:$true] %s233
          %236 = dma.hbm_to_vmem [thread:$0]  %s231, 128, %s234, %s219
        $region24: #{tpu_custom_call.1} parent=15 // pred_fallthru
          _
      $region16: #{tpu_custom_call.1} parent=5 // pred_fallthru
        _
      %p237 = scmp.le.s32.totalorder 1, %s23
      %p238 = scmp.lt.s32.totalorder %s23, 3
      %p239 = pnand %p237, %p238
      %p240 = pneg %p239
      // Predicated region
      $region25: #{tpu_custom_call.1} parent=5 // pred_check
        _
      $region26: #{tpu_custom_call.1} parent=5 // pred_check_branch
        %242 = sbr.rel (%p239) target = $region28
      $region27: #{tpu_custom_call.1} parent=5 // pred_region
        %s243 = ssub.s32 %s23, 1
        %s244 = sand.u32 %s50, 1
        %s245 = scalar_lea.sflag [#allocation3], %s244
        %s246 = sand.u32 %s50, 1
        %s247 = smul.addr %s246, 8
        %s248 = scalar_lea.vmem [#allocation2], %s247
        // Predicated region
        $region29: #{tpu_custom_call.1} parent=27 // pred_check
          %p249 = pneg %p63
        $region30: #{tpu_custom_call.1} parent=27 // pred_check_branch
          %251 = sbr.rel (%p249) target = $region32
        $region31: #{tpu_custom_call.1} parent=27 // pred_region
          %252 = dma.done %s245, 128
        $region32: #{tpu_custom_call.1} parent=27 // pred_fallthru
          _
        %s253 = sand.u32 %s78, 1
        %s254 = scalar_lea.sflag [#allocation6], %s253
        %s255 = sand.u32 %s78, 1
        %s256 = smul.addr %s255, 8
        %s257 = scalar_lea.vmem [#allocation5], %s256
        // Predicated region
        $region33: #{tpu_custom_call.1} parent=27 // pred_check
          %p258 = pneg %p91
        $region34: #{tpu_custom_call.1} parent=27 // pred_check_branch
          %260 = sbr.rel (%p258) target = $region36
        $region35: #{tpu_custom_call.1} parent=27 // pred_region
          %261 = dma.done %s254, 128
        $region36: #{tpu_custom_call.1} parent=27 // pred_fallthru
          _
        %s262 = sand.u32 %s50, 1
        %s263 = scalar_lea.sflag [#allocation3], %s262
        %s264 = sand.u32 %s50, 1
        %s265 = smul.addr %s264, 8
        %s266 = scalar_lea.vmem [#allocation2], %s265
        %p267 = pneg %p63
        %p268 = pneg %p60
        %s269 = sand.u32 %s78, 1
        %s270 = scalar_lea.sflag [#allocation6], %s269
        %s271 = sand.u32 %s78, 1
        %s272 = smul.addr %s271, 8
        %s273 = scalar_lea.vmem [#allocation5], %s272
        %p274 = pneg %p91
        %p275 = pneg %p88
        %p276 = pneg %p119
        %p277 = pneg %p116
        %s278 = sand.u32 %s106, 1
        %s279 = scalar_lea.sflag [#allocation4], %s278
        %s280 = sand.u32 %s106, 1
        %s281 = smul.addr %s280, 8
        %s282 = scalar_lea.vmem [#allocation7], %s281
        %p283 = pneg %p147
        %p284 = pneg %p144
        %s285 = sand.u32 %s28, 1
        %s286 = scalar_lea.sflag [#allocation9], %s285
        %s287 = sand.u32 %s134, 1
        %s288 = smul.addr %s287, 8
        %s289 = scalar_lea.vmem [#allocation8], %s288
        %p290 = pneg %p175
        %p291 = pneg %p172
        %s292 = sand.u32 %s28, 1
        %s293 = scalar_lea.sflag [#allocation9], %s292
        %s294 = sand.u32 %s162, 1
        %s295 = smul.addr %s294, 8
        %s296 = scalar_lea.vmem [#allocation10], %s295
        %v297 = vld [vmem:[%s248] sm:$0xff]
        %v298 = vmax.f32 %v297, 0.0
        %v299 = vand.u32 2147483647, %v297
        %v300 = vsub.f32 0.0, %v299
        %v301 = vmul.f32 %v300, 1.442695
        %v302 = vpow.pop %v301
        %v303 = vadd.f32 %v302, 1.0
        %v304 = vlog2.pop %v303
        %v305 = vmul.f32 %v304, 0.6931472
        %v306 = vmul.f32 -0.5, %v302
        %v307 = vadd.f32 %v306, 1.0
        %v308 = vmul.f32 %v307, %v302
        %v309 = vand.u32 2147483647, %v302
        %vm310 = vcmp.lt.f32.partialorder %v309, 0.0004427343
        %v311 = vsel %vm310, %v308, %v305
        %v312 = vadd.f32 %v298, %v311
        %v313 = vld [vmem:[%s257] sm:$0xff]
        %v314 = vmax.f32 %v313, 0.0
        %v315 = vand.u32 2147483647, %v313
        %v316 = vsub.f32 0.0, %v315
        %v317 = vmul.f32 %v316, 1.442695
        %v318 = vpow.pop %v317
        %v319 = vadd.f32 %v318, 1.0
        %v320 = vlog2.pop %v319
        %v321 = vmul.f32 %v320, 0.6931472
        %v322 = vmul.f32 -0.5, %v318
        %v323 = vadd.f32 %v322, 1.0
        %v324 = vmul.f32 %v323, %v318
        %v325 = vand.u32 2147483647, %v318
        %vm326 = vcmp.lt.f32.partialorder %v325, 0.0004427343
        %v327 = vsel %vm326, %v324, %v321
        %v328 = vadd.f32 %v314, %v327
        %329 = vst [vmem:[%s282] sm:$0xff] %v312
        %330 = vst [vmem:[%s289] sm:$0xff] %v328
        %v331 = vadd.f32 %v312, %v328
        %v332 = vrcp.pop %v331
        %v333 = vmul.f32 %v312, %v332
        %334 = vst [vmem:[%s296] sm:$0xff] %v333
        %s335 = sand.u32 %s106, 1
        %s336 = scalar_lea.sflag [#allocation4], %s335
        %s337 = sand.u32 %s106, 1
        %s338 = smul.addr %s337, 8
        %s339 = scalar_lea.vmem [#allocation7], %s338
        %s340 = sand.u32 %s28, 1
        %s341 = scalar_lea.sflag [#allocation9], %s340
        %s342 = sand.u32 %s134, 1
        %s343 = smul.addr %s342, 8
        %s344 = scalar_lea.vmem [#allocation8], %s343
        %s345 = sand.u32 %s28, 1
        %s346 = scalar_lea.sflag [#allocation9], %s345
        %s347 = sand.u32 %s162, 1
        %s348 = smul.addr %s347, 8
        %s349 = scalar_lea.vmem [#allocation10], %s348
        // Predicated region
        $region37: #{tpu_custom_call.1} parent=27 // pred_check
          %p350 = pneg %p116
        $region38: #{tpu_custom_call.1} parent=27 // pred_check_branch
          %352 = sbr.rel (%p350) target = $region40
        $region39: #{tpu_custom_call.1} parent=27 // pred_region
          %s354 = ssub.s32 128, 128
          %355 = vsyncadd %s336, %s354
          %s356 = smul.addr %s33, 2
          %s357 = smul.addr %s32, 2
          %s358 = sadd.s32 %s356, %s357
          %s359 = smul.addr %s358, 64
          %s360 = scalar_lea.hbm %s2, %s359
          %s362 = sshll.u32 %s339, 4
          %s363 = int_to_ptr.vmem [resolvable:$true] %s362
          %365 = dma.vmem_to_hbm [thread:$0]  %s363, 128, %s360, %s336
        $region40: #{tpu_custom_call.1} parent=27 // pred_fallthru
          _
        // Predicated region
        $region41: #{tpu_custom_call.1} parent=27 // pred_check
          %p366 = pneg %p144
        $region42: #{tpu_custom_call.1} parent=27 // pred_check_branch
          %368 = sbr.rel (%p366) target = $region44
        $region43: #{tpu_custom_call.1} parent=27 // pred_region
          %s370 = ssub.s32 128, 128
          %371 = vsyncadd %s341, %s370
          %s372 = smul.addr %s33, 2
          %s373 = smul.addr %s32, 2
          %s374 = sadd.s32 %s372, %s373
          %s375 = smul.addr %s374, 64
          %s376 = scalar_lea.hbm %s3, %s375
          %s378 = sshll.u32 %s344, 4
          %s379 = int_to_ptr.vmem [resolvable:$true] %s378
          %381 = dma.vmem_to_hbm [thread:$0]  %s379, 128, %s376, %s341
        $region44: #{tpu_custom_call.1} parent=27 // pred_fallthru
          _
        // Predicated region
        $region45: #{tpu_custom_call.1} parent=27 // pred_check
          %p382 = pneg %p172
        $region46: #{tpu_custom_call.1} parent=27 // pred_check_branch
          %384 = sbr.rel (%p382) target = $region48
        $region47: #{tpu_custom_call.1} parent=27 // pred_region
          %s386 = ssub.s32 128, 128
          %387 = vsyncadd %s346, %s386
          %s388 = smul.addr %s33, 2
          %s389 = smul.addr %s32, 2
          %s390 = sadd.s32 %s388, %s389
          %s391 = smul.addr %s390, 64
          %s392 = scalar_lea.hbm %s4, %s391
          %s394 = sshll.u32 %s349, 4
          %s395 = int_to_ptr.vmem [resolvable:$true] %s394
          %397 = dma.vmem_to_hbm [thread:$0]  %s395, 128, %s392, %s346
        $region48: #{tpu_custom_call.1} parent=27 // pred_fallthru
          _
      $region28: #{tpu_custom_call.1} parent=5 // pred_fallthru
        _
      %p398 = scmp.le.s32.totalorder 2, %s23
      // Predicated region
      $region49: #{tpu_custom_call.1} parent=5 // pred_check
        %p399 = pneg %p398
      $region50: #{tpu_custom_call.1} parent=5 // pred_check_branch
        %401 = sbr.rel (%p399) target = $region52
      $region51: #{tpu_custom_call.1} parent=5 // pred_region
        %s402 = ssub.s32 %s23, 2
        // Predicated region
        $region53: #{tpu_custom_call.1} parent=51 // pred_check
          %p403 = pneg %p122
        $region54: #{tpu_custom_call.1} parent=51 // pred_check_branch
          %405 = sbr.rel (%p403) target = $region56
        $region55: #{tpu_custom_call.1} parent=51 // pred_region
          %s406 = sand.u32 %s107, 1
          %s407 = scalar_lea.sflag [#allocation4], %s406
          %s408 = sand.u32 %s107, 1
          %s409 = smul.addr %s408, 8
          %s410 = scalar_lea.vmem [#allocation7], %s409
          %411 = dma.done %s407, 128
        $region56: #{tpu_custom_call.1} parent=51 // pred_fallthru
          _
        // Predicated region
        $region57: #{tpu_custom_call.1} parent=51 // pred_check
          %p412 = pneg %p150
        $region58: #{tpu_custom_call.1} parent=51 // pred_check_branch
          %414 = sbr.rel (%p412) target = $region60
        $region59: #{tpu_custom_call.1} parent=51 // pred_region
          %s415 = sand.u32 %s29, 1
          %s416 = scalar_lea.sflag [#allocation9], %s415
          %s417 = sand.u32 %s135, 1
          %s418 = smul.addr %s417, 8
          %s419 = scalar_lea.vmem [#allocation8], %s418
          %420 = dma.done %s416, 128
        $region60: #{tpu_custom_call.1} parent=51 // pred_fallthru
          _
        // Predicated region
        $region61: #{tpu_custom_call.1} parent=51 // pred_check
          %p421 = pneg %p178
        $region62: #{tpu_custom_call.1} parent=51 // pred_check_branch
          %423 = sbr.rel (%p421) target = $region64
        $region63: #{tpu_custom_call.1} parent=51 // pred_region
          %s424 = sand.u32 %s29, 1
          %s425 = scalar_lea.sflag [#allocation9], %s424
          %s426 = sand.u32 %s163, 1
          %s427 = smul.addr %s426, 8
          %s428 = scalar_lea.vmem [#allocation10], %s427
          %429 = dma.done %s425, 128
        $region64: #{tpu_custom_call.1} parent=51 // pred_fallthru
          _
      $region52: #{tpu_custom_call.1} parent=5 // pred_fallthru
        _
    $region6: #{tpu_custom_call.1} parent=1 // loop_footer
      %s27 = sadd.s32 1, %s23
    $region7: #{tpu_custom_call.1} parent=1 // loop_footer_branch
      %22 = sbr.rel target = $region3
    $region8: #{tpu_custom_call.1} parent=1 // loop_exit
      _
    %430 = vsyncpa [#allocation3], 1
    %s431 = scalar_lea.sflag [#allocation3], 1
    %432 = vsyncpa %s431, 1
    %433 = vsyncpa [#allocation6], 1
    %s434 = scalar_lea.sflag [#allocation6], 1
    %435 = vsyncpa %s434, 1
    %436 = vsyncpa [#allocation4], 1
    %s437 = scalar_lea.sflag [#allocation4], 1
    %438 = vsyncpa %s437, 1
    %439 = vsyncpa [#allocation9], 1
    %s440 = scalar_lea.sflag [#allocation9], 1
    %441 = vsyncpa %s440, 1

</llo_original>
